<compile_context>
chip_gen: v5e
topology: v5e:2x2
jax: 0.10.0
libtpu: 0.0.40
codegen_flags: <defaults>
</compile_context>

<pallas_src>
import jax
import jax.numpy as jnp
from jax import lax
from jax.experimental import pallas as pl
from jax.experimental.pallas import tpu as pltpu
import numpy as np


def dora_kernel(x_ref, wT_ref, laT_ref, lbT_ref, m_ref, b_ref, o_ref, acc_ref):
    i = pl.program_id(1)  # d_in reduction axis (innermost)

    @pl.when(i == 0)
    def _():
        acc_ref[...] = jnp.zeros_like(acc_ref)

    # LoRA block on the MXU: (tile_i, rank) @ (rank, d_out) -> (tile_i, d_out).
    lora_T = jnp.dot(lbT_ref[...], laT_ref[...],
                     preferred_element_type=jnp.float32)
    # adapted^T block; norm math stays in f32 even when operands are bf16.
    adapted_T = wT_ref[...].astype(jnp.float32) + lora_T        # (tile_i, d_out)

    # Per-d_in-column sum of squares over d_out (lane-axis reduce -> (tile_i,1)).
    sum_sq = jnp.sum(adapted_T * adapted_T, axis=1, keepdims=True)

    # Fused DoRA scale m / ||col||: rsqrt goes to the EUP; one Newton step keeps
    # full f32 accuracy even if the hardware rsqrt is approximate — a handful of
    # VPU ops on a (tile_i, 1) vector, negligible cost.
    inv_norm = lax.rsqrt(sum_sq)
    inv_norm = inv_norm * (1.5 - 0.5 * sum_sq * inv_norm * inv_norm)
    scale = m_ref[...].astype(jnp.float32) * inv_norm           # (tile_i, 1)

    # Single vmul per weight element (no divide, no separate m multiply).
    calc_wT = (scale * adapted_T).astype(x_ref.dtype)           # (tile_i, d_out)

    # (tile_b, tile_i) @ (tile_i, d_out): native contraction, no transpose.
    acc_ref[...] += jnp.dot(x_ref[...], calc_wT,
                            preferred_element_type=jnp.float32)

    @pl.when(i == pl.num_programs(1) - 1)
    def _():
        o_ref[...] = (acc_ref[...]
                      + b_ref[...].astype(jnp.float32)).astype(o_ref.dtype)


def _pick_tile(dim, candidates):
    for c in candidates:
        if dim % c == 0:
            return c
    return dim  # full extent is always a legal block size


def dora_forward(x, weight, bias, m, lora_A, lora_B,
                 *, tile_d_in=None, tile_batch=None):
    batch, d_in = x.shape
    d_out = weight.shape[0]
    rank = lora_A.shape[1]

    # Wrapper-side layout plumbing (done once by XLA, outside the kernel).
    wT = weight.T                      # (d_in, d_out)
    laT = lora_A.T                     # (rank, d_out)
    lbT = lora_B.T                     # (d_in, rank)
    m_col = m.reshape(d_in, 1)         # (d_in, 1)
    bias2d = bias.reshape(1, d_out)    # (1, d_out)

    # Lane-friendly tiles: multiples of 128 along d_in (or the full extent).
    tile_i = tile_d_in or _pick_tile(d_in, (512, 256, 128))
    tile_b = tile_batch or _pick_tile(batch, (256, 128, 64, 32, 16, 8))
    n_b = batch // tile_b
    n_i = d_in // tile_i

    grid_spec = pltpu.PrefetchScalarGridSpec(
        num_scalar_prefetch=0,
        grid=(n_b, n_i),  # reduction (d_in) axis last
        in_specs=[
            pl.BlockSpec((tile_b, tile_i), lambda b, i: (b, i)),   # x
            pl.BlockSpec((tile_i, d_out), lambda b, i: (i, 0)),    # weight^T
            pl.BlockSpec((rank, d_out), lambda b, i: (0, 0)),      # lora_A^T
            pl.BlockSpec((tile_i, rank), lambda b, i: (i, 0)),     # lora_B^T
            pl.BlockSpec((tile_i, 1), lambda b, i: (i, 0)),        # m^T
            pl.BlockSpec((1, d_out), lambda b, i: (0, 0)),         # bias
        ],
        out_specs=pl.BlockSpec((tile_b, d_out), lambda b, i: (b, 0)),
        scratch_shapes=[pltpu.VMEM((tile_b, d_out), jnp.float32)],
    )

    return pl.pallas_call(
        dora_kernel,
        out_shape=jax.ShapeDtypeStruct((batch, d_out), x.dtype),
        grid_spec=grid_spec,
        compiler_params=pltpu.CompilerParams(
            dimension_semantics=("parallel", "arbitrary"),
            vmem_limit_bytes=64 * 1024 * 1024,
        ),
    )(x, wT, laT, lbT, m_col, bias2d)


def dora_reference(x, weight, bias, m, lora_A, lora_B):
    lora = lora_A @ lora_B
    adapted = weight + lora
    column_norm = jnp.sqrt(jnp.sum(adapted * adapted, axis=0, keepdims=True))
    calc_w = m * (adapted / column_norm)
    return x @ calc_w.T + bias[None, :]


if __name__ == "__main__":
    batch, d_in, d_out, rank = 8, 512, 128, 4

    key = jax.random.PRNGKey(0)
    k_w, k_b, k_a, k_lb, k_x = jax.random.split(key, 5)

    # Deterministic synthetic parameters (shapes per DoRALayer.__init__).
    weight = jax.random.normal(k_w, (d_out, d_in), jnp.float32)
    bias = jax.random.normal(k_b, (d_out,), jnp.float32)
    # m = ||weight||_2 over dim=0, keepdim -> (1, d_in)
    m = jnp.sqrt(jnp.sum(weight * weight, axis=0, keepdims=True))
    # Module initializes lora_A/B to zeros; use small nonzero values so the
    # low-rank path is actually exercised (still deterministic).
    lora_A = 0.1 * jax.random.normal(k_a, (d_out, rank), jnp.float32)
    lora_B = 0.1 * jax.random.normal(k_lb, (rank, d_in), jnp.float32)
    x = jax.random.normal(k_x, (batch, d_in), jnp.float32)

    # f32 path; tile_d_in=128 -> grid (1, 4) exercises the streamed reduction +
    # accumulator pipeline. atol allows for f32 accumulation-order differences.
    out = jax.block_until_ready(
        dora_forward(x, weight, bias, m, lora_A, lora_B, tile_d_in=128))
    ref = dora_reference(x, weight, bias, m, lora_A, lora_B)
    np.testing.assert_allclose(np.asarray(out), np.asarray(ref),
                               rtol=1e-4, atol=1e-3)

    # bf16 path: MXU operands in bf16 (f32 accumulation + f32 norm math inside).
    bf16 = lambda a: a.astype(jnp.bfloat16)
    args_bf16 = tuple(bf16(a) for a in (x, weight, bias, m, lora_A, lora_B))
    out_bf16 = jax.block_until_ready(dora_forward(*args_bf16, tile_d_in=128))
    ref_bf16 = dora_reference(*(a.astype(jnp.float32) for a in args_bf16))
    np.testing.assert_allclose(np.asarray(out_bf16.astype(jnp.float32)),
                               np.asarray(ref_bf16), rtol=5e-2, atol=1.0)

    print("KERNEL_OK")
</pallas_src>

<mosaic_0001>
module attributes {stable_mosaic.version = 11 : i64} {
  func.func @dora_kernel(%arg0: i32, %arg1: i32, %arg2: memref<8x128xf32, #tpu.memory_space<vmem>>, %arg3: memref<128x128xf32, #tpu.memory_space<vmem>>, %arg4: memref<4x128xf32, #tpu.memory_space<vmem>>, %arg5: memref<128x4xf32, #tpu.memory_space<vmem>>, %arg6: memref<128x1xf32, #tpu.memory_space<vmem>>, %arg7: memref<1x128xf32, #tpu.memory_space<vmem>>, %arg8: memref<8x128xf32, #tpu.memory_space<vmem>>, %arg9: memref<8x128xf32, #tpu.memory_space<vmem>>) attributes {dimension_semantics = [#tpu.dimension_semantics<parallel>, #tpu.dimension_semantics<arbitrary>], iteration_bounds = array<i64: 1, 4>, scalar_prefetch = 0 : i64, scratch_operands = 1 : i64, tpu.core_type = #tpu.core_type<tc>, window_params = [{transform_indices = @transform_0, window_bounds = array<i64: 8, 128>}, {transform_indices = @transform_1, window_bounds = array<i64: 128, 128>}, {pipeline_mode = #tpu.pipeline_mode<synchronous>, transform_indices = @transform_2, window_bounds = array<i64: 4, 128>}, {transform_indices = @transform_3, window_bounds = array<i64: 128, 4>}, {transform_indices = @transform_4, window_bounds = array<i64: 128, 1>}, {pipeline_mode = #tpu.pipeline_mode<synchronous>, transform_indices = @transform_5, window_bounds = array<i64: 1, 128>}, {transform_indices = @transform_6, window_bounds = array<i64: 8, 128>}]} {
    %c0_i32 = arith.constant 0 : i32
    %0 = arith.cmpi eq, %arg1, %c0_i32 : i32
    %1 = arith.extui %0 : i1 to i32
    %c0_i32_0 = arith.constant 0 : i32
    %2 = arith.cmpi ne, %1, %c0_i32_0 : i32
    scf.if %2 {
      %cst_19 = arith.constant 0.000000e+00 : f32
      %31 = vector.broadcast %cst_19 : f32 to vector<8x128xf32>
      %c0_20 = arith.constant 0 : index
      %c0_21 = arith.constant 0 : index
      %32 = vector.load %arg9[%c0_20, %c0_21] : memref<8x128xf32, #tpu.memory_space<vmem>>, vector<8x128xf32>
      tpu.vector_store %arg9[%c0_20, %c0_21], %31 {strides = array<i32>} : memref<8x128xf32, #tpu.memory_space<vmem>>, vector<8x128xf32>,
    } else {
    }
    %c0 = arith.constant 0 : index
    %c0_1 = arith.constant 0 : index
    %3 = vector.load %arg5[%c0, %c0_1] : memref<128x4xf32, #tpu.memory_space<vmem>>, vector<128x4xf32>
    %c0_2 = arith.constant 0 : index
    %c0_3 = arith.constant 0 : index
    %4 = vector.load %arg4[%c0_2, %c0_3] : memref<4x128xf32, #tpu.memory_space<vmem>>, vector<4x128xf32>
    %cst = arith.constant dense<0.000000e+00> : vector<128x128xf32>
    %5 = tpu.matmul %3, %4, %cst {dimension_numbers = #tpu.dot_dimension_numbers<[1], [0], [0], [1], [0, 0, 1, 1], [], []>} : vector<128x4xf32>, vector<4x128xf32>, vector<128x128xf32> -> vector<128x128xf32>
    %c0_4 = arith.constant 0 : index
    %c0_5 = arith.constant 0 : index
    %6 = vector.load %arg3[%c0_4, %c0_5] : memref<128x128xf32, #tpu.memory_space<vmem>>, vector<128x128xf32>
    %7 = arith.addf %6, %5 : vector<128x128xf32>
    %8 = arith.mulf %7, %7 : vector<128x128xf32>
    %cst_6 = arith.constant dense<0.000000e+00> : vector<128xf32>
    %9 = vector.multi_reduction <add>, %8, %cst_6 [1] : vector<128x128xf32> to vector<128xf32>
    %10 = vector.shape_cast %9 : vector<128xf32> to vector<128x1xf32>
    %11 = math.rsqrt %10 : vector<128x1xf32>
    %cst_7 = arith.constant 5.000000e-01 : f32
    %12 = vector.broadcast %cst_7 : f32 to vector<128x1xf32>
    %13 = arith.mulf %12, %10 : vector<128x1xf32>
    %14 = arith.mulf %13, %11 : vector<128x1xf32>
    %15 = arith.mulf %14, %11 : vector<128x1xf32>
    %cst_8 = arith.constant 1.500000e+00 : f32
    %16 = vector.broadcast %cst_8 : f32 to vector<128x1xf32>
    %17 = arith.subf %16, %15 : vector<128x1xf32>
    %18 = arith.mulf %11, %17 : vector<128x1xf32>
    %c0_9 = arith.constant 0 : index
    %c0_10 = arith.constant 0 : index
    %19 = vector.load %arg6[%c0_9, %c0_10] : memref<128x1xf32, #tpu.memory_space<vmem>>, vector<128x1xf32>
    %20 = arith.mulf %19, %18 : vector<128x1xf32>
    %21 = vector.broadcast %20 : vector<128x1xf32> to vector<128x128xf32>
    %22 = arith.mulf %21, %7 : vector<128x128xf32>
    %c0_11 = arith.constant 0 : index
    %c0_12 = arith.constant 0 : index
    %23 = vector.load %arg9[%c0_11, %c0_12] : memref<8x128xf32, #tpu.memory_space<vmem>>, vector<8x128xf32>
    %c0_13 = arith.constant 0 : index
    %c0_14 = arith.constant 0 : index
    %24 = vector.load %arg2[%c0_13, %c0_14] : memref<8x128xf32, #tpu.memory_space<vmem>>, vector<8x128xf32>
    %cst_15 = arith.constant dense<0.000000e+00> : vector<8x128xf32>
    %25 = tpu.matmul %24, %22, %cst_15 {dimension_numbers = #tpu.dot_dimension_numbers<[1], [0], [0], [1], [0, 0, 1, 1], [], []>} : vector<8x128xf32>, vector<128x128xf32>, vector<8x128xf32> -> vector<8x128xf32>
    %26 = arith.addf %23, %25 : vector<8x128xf32>
    %c0_16 = arith.constant 0 : index
    %c0_17 = arith.constant 0 : index
    %27 = vector.load %arg9[%c0_16, %c0_17] : memref<8x128xf32, #tpu.memory_space<vmem>>, vector<8x128xf32>
    tpu.vector_store %arg9[%c0_16, %c0_17], %26 {strides = array<i32>} : memref<8x128xf32, #tpu.memory_space<vmem>>, vector<8x128xf32>,
    %c3_i32 = arith.constant 3 : i32
    %28 = arith.cmpi eq, %arg1, %c3_i32 : i32
    %29 = arith.extui %28 : i1 to i32
    %c0_i32_18 = arith.constant 0 : i32
    %30 = arith.cmpi ne, %29, %c0_i32_18 : i32
    scf.if %30 {
      %c0_19 = arith.constant 0 : index
      %c0_20 = arith.constant 0 : index
      %31 = vector.load %arg9[%c0_19, %c0_20] : memref<8x128xf32, #tpu.memory_space<vmem>>, vector<8x128xf32>
      %c0_21 = arith.constant 0 : index
      %c0_22 = arith.constant 0 : index
      %32 = vector.load %arg7[%c0_21, %c0_22] : memref<1x128xf32, #tpu.memory_space<vmem>>, vector<1x128xf32>
      %33 = vector.broadcast %32 : vector<1x128xf32> to vector<8x128xf32>
      %34 = arith.addf %31, %33 : vector<8x128xf32>
      %c0_23 = arith.constant 0 : index
      %c0_24 = arith.constant 0 : index
      %35 = vector.load %arg8[%c0_23, %c0_24] : memref<8x128xf32, #tpu.memory_space<vmem>>, vector<8x128xf32>
      tpu.vector_store %arg8[%c0_23, %c0_24], %34 {strides = array<i32>} : memref<8x128xf32, #tpu.memory_space<vmem>>, vector<8x128xf32>,
    } else {
    }
    return
  }
  func.func @transform_0(%arg0: i32, %arg1: i32) -> (i32, i32) {
    %c0_i32 = arith.constant 0 : i32
    return %arg0, %arg1 : i32, i32
  }
  func.func @transform_1(%arg0: i32, %arg1: i32) -> (i32, i32) {
    %c0_i32 = arith.constant 0 : i32
    %c0_i32_0 = arith.constant 0 : i32
    return %arg1, %c0_i32 : i32, i32
  }
  func.func @transform_2(%arg0: i32, %arg1: i32) -> (i32, i32) {
    %c0_i32 = arith.constant 0 : i32
    %c0_i32_0 = arith.constant 0 : i32
    %c0_i32_1 = arith.constant 0 : i32
    return %c0_i32, %c0_i32_0 : i32, i32
  }
  func.func @transform_3(%arg0: i32, %arg1: i32) -> (i32, i32) {
    %c0_i32 = arith.constant 0 : i32
    %c0_i32_0 = arith.constant 0 : i32
    return %arg1, %c0_i32 : i32, i32
  }
  func.func @transform_4(%arg0: i32, %arg1: i32) -> (i32, i32) {
    %c0_i32 = arith.constant 0 : i32
    %c0_i32_0 = arith.constant 0 : i32
    return %arg1, %c0_i32 : i32, i32
  }
  func.func @transform_5(%arg0: i32, %arg1: i32) -> (i32, i32) {
    %c0_i32 = arith.constant 0 : i32
    %c0_i32_0 = arith.constant 0 : i32
    %c0_i32_1 = arith.constant 0 : i32
    return %c0_i32, %c0_i32_0 : i32, i32
  }
  func.func @transform_6(%arg0: i32, %arg1: i32) -> (i32, i32) {
    %c0_i32 = arith.constant 0 : i32
    %c0_i32_0 = arith.constant 0 : i32
    return %arg0, %c0_i32 : i32, i32
  }
}

</mosaic_0001>

<llo_original>
// kernel: tpu_custom_call.1
$region0: #{tpu_custom_call.1}
  #allocation0 [shape = 'u32[]', space=smem, size = 0x4, offset = 0x4, fixed_abs, tag = 'smem constant byte address 0x4 - core index']
  #allocation1 [shape = 'u32[72,128]{1,0:T(1,128)}', space=vmem, size = 0x9000, scoped, tag = 'internal scratch']
  #allocation2 [shape = 'f32[8,128]{1,0:T(8,128)}', space=vmem, size = 0x1000, scoped, tag = 'scratch operand']
  %s0 = inlined_call_operand.vmem [shape: f32[8,512], index: 0, kind: input, shape index: {}]
  %s1 = inlined_call_operand.vmem [shape: f32[512,128], index: 1, kind: input, shape index: {}]
  %s2 = inlined_call_operand.vmem [shape: f32[4,128], index: 2, kind: input, shape index: {}]
  %s3 = inlined_call_operand.vmem [shape: f32[512,4], index: 3, kind: input, shape index: {}]
  %s4 = inlined_call_operand.vmem [shape: f32[512,1], index: 4, kind: input, shape index: {}]
  %s5 = inlined_call_operand.vmem [shape: f32[1,128], index: 5, kind: input, shape index: {}]
  %s6 = inlined_call_operand.hbm [shape: f32[8,128], index: 6, kind: output, shape index: {}]
  %s7 = sld [smem:[#allocation0]]
  $region65: #{tpu_custom_call.1} parent=0
    _
  %s9 = ssub.s32 1, %s7
  %s10 = scalar_select 0, %s9, %s7
  $region1: #{tpu_custom_call.1} parent=0
    #allocation3 [shape = 'u8[4096]{0}', space=vmem, size = 0x1000, scoped, tag = 'output window, operand 0, single buffered']
    #allocation4 [shape = 's32[2]{0}', space=sflag, size = 0x8, scoped, tag = 'scoped memory for tpu_custom_call.1']
    %11 = vsyncpa [#allocation4], 0
    loop: start=0, step=1, limit=6
    $region2: #{tpu_custom_call.1} parent=1 // loop_pre_header
      _
    $region3: #{tpu_custom_call.1} parent=1 // loop_header
      %s13 = sphi 0, %s17
      %p14 = scmp.ge.s32.totalorder %s13, 6
      %s20 = sphi 0, %s32
      %s21 = sphi 0, %s28
      %s22 = sphi 0, %s20
      %s23 = sphi 0, %s21
      %s24 = sphi 0, %s22
      %s25 = sphi 0, %s23
      %s37 = sphi 0, %s39
      %s40 = sphi 0, %s37
      %s41 = sphi 0, %s40
      %s57 = sphi 0, %s41
      %s63 = sphi 0, %s65
      %s66 = sphi 0, %s63
      %s67 = sphi 0, %s66
      %s83 = sphi 0, %s67
      %s87 = sphi 0, %s87
      %s89 = sphi 0, %s87
      %s90 = sphi 0, %s89
      %s104 = sphi 0, %s90
      %s110 = sphi 0, %s112
      %s113 = sphi 0, %s110
      %s114 = sphi 0, %s113
      %s130 = sphi 0, %s114
      %s136 = sphi 0, %s138
      %s139 = sphi 0, %s136
      %s140 = sphi 0, %s139
      %s156 = sphi 0, %s140
      %s160 = sphi 0, %s160
      %s162 = sphi 0, %s160
      %s163 = sphi 0, %s162
      %s177 = sphi 0, %s163
      %s183 = sphi 0, %s185
      %s186 = sphi 0, %s183
      %s187 = sphi 0, %s186
      %s203 = sphi 0, %s187
    $region4: #{tpu_custom_call.1} parent=1 // loop_header_branch
      %16 = sbr.rel (%p14) target = $region8
    $region5: #{tpu_custom_call.1} parent=1 // loop_body
      %s18 = ssub.s32 %s13, 1
      %s19 = ssub.s32 %s13, 2
      %s26 = sadd.s32 1, %s21
      %p27 = scmp.ge.s32.totalorder %s26, 4
      %s28 = scalar_select %p27, 0, %s26
      %s29 = sadd.s32 1, %s20
      %s30 = scalar_select %p27, %s29, %s20
      %p31 = scmp.ge.s32.totalorder %s30, 1
      %s32 = scalar_select %p31, 0, %s30
      %s33 = ssub.s32 %s20, %s32
      %s34 = ssub.s32 %s21, %s28
      %s35 = sor.u32 %s33, %s34
      %p36 = scmp.eq.s32.totalorder %s35, 0
      %s38 = sadd.s32 %s37, 1
      %s39 = scalar_select %p36, %s37, %s38
      %p42 = pneg %p36
      %p43 = scmp.eq.s32.totalorder %s13, 3
      %p44 = por %p42, %p43
      %p45 = scmp.ne.s32.totalorder %s37, %s40
      %p46 = scmp.eq.s32.totalorder %s13, 0
      %p47 = por %p45, %p46
      %p48 = scmp.ne.s32.totalorder %s37, %s40
      %p49 = scmp.eq.s32.totalorder %s18, 3
      %p50 = por %p48, %p49
      %p51 = scmp.ne.s32.totalorder %s40, %s41
      %p52 = scmp.eq.s32.totalorder %s18, 0
      %p53 = por %p51, %p52
      %p54 = scmp.ne.s32.totalorder %s40, %s41
      %p55 = scmp.eq.s32.totalorder %s19, 3
      %p56 = por %p54, %p55
      %p58 = scmp.ne.s32.totalorder %s41, %s57
      %p59 = scmp.eq.s32.totalorder %s19, 0
      %p60 = por %p58, %p59
      %s61 = ssub.s32 %s21, %s28
      %p62 = scmp.eq.s32.totalorder %s61, 0
      %s64 = sadd.s32 %s63, 1
      %s65 = scalar_select %p62, %s63, %s64
      %p68 = pneg %p62
      %p69 = scmp.eq.s32.totalorder %s13, 3
      %p70 = por %p68, %p69
      %p71 = scmp.ne.s32.totalorder %s63, %s66
      %p72 = scmp.eq.s32.totalorder %s13, 0
      %p73 = por %p71, %p72
      %p74 = scmp.ne.s32.totalorder %s63, %s66
      %p75 = scmp.eq.s32.totalorder %s18, 3
      %p76 = por %p74, %p75
      %p77 = scmp.ne.s32.totalorder %s66, %s67
      %p78 = scmp.eq.s32.totalorder %s18, 0
      %p79 = por %p77, %p78
      %p80 = scmp.ne.s32.totalorder %s66, %s67
      %p81 = scmp.eq.s32.totalorder %s19, 3
      %p82 = por %p80, %p81
      %p84 = scmp.ne.s32.totalorder %s67, %s83
      %p85 = scmp.eq.s32.totalorder %s19, 0
      %p86 = por %p84, %p85
      %s88 = sadd.s32 %s87, 1
      %p91 = scmp.eq.s32.totalorder %s13, 3
      %p92 = scmp.ne.s32.totalorder %s87, %s89
      %p93 = scmp.eq.s32.totalorder %s13, 0
      %p94 = por %p92, %p93
      %p95 = scmp.ne.s32.totalorder %s87, %s89
      %p96 = scmp.eq.s32.totalorder %s18, 3
      %p97 = por %p95, %p96
      %p98 = scmp.ne.s32.totalorder %s89, %s90
      %p99 = scmp.eq.s32.totalorder %s18, 0
      %p100 = por %p98, %p99
      %p101 = scmp.ne.s32.totalorder %s89, %s90
      %p102 = scmp.eq.s32.totalorder %s19, 3
      %p103 = por %p101, %p102
      %p105 = scmp.ne.s32.totalorder %s90, %s104
      %p106 = scmp.eq.s32.totalorder %s19, 0
      %p107 = por %p105, %p106
      %s108 = ssub.s32 %s21, %s28
      %p109 = scmp.eq.s32.totalorder %s108, 0
      %s111 = sadd.s32 %s110, 1
      %s112 = scalar_select %p109, %s110, %s111
      %p115 = pneg %p109
      %p116 = scmp.eq.s32.totalorder %s13, 3
      %p117 = por %p115, %p116
      %p118 = scmp.ne.s32.totalorder %s110, %s113
      %p119 = scmp.eq.s32.totalorder %s13, 0
      %p120 = por %p118, %p119
      %p121 = scmp.ne.s32.totalorder %s110, %s113
      %p122 = scmp.eq.s32.totalorder %s18, 3
      %p123 = por %p121, %p122
      %p124 = scmp.ne.s32.totalorder %s113, %s114
      %p125 = scmp.eq.s32.totalorder %s18, 0
      %p126 = por %p124, %p125
      %p127 = scmp.ne.s32.totalorder %s113, %s114
      %p128 = scmp.eq.s32.totalorder %s19, 3
      %p129 = por %p127, %p128
      %p131 = scmp.ne.s32.totalorder %s114, %s130
      %p132 = scmp.eq.s32.totalorder %s19, 0
      %p133 = por %p131, %p132
      %s134 = ssub.s32 %s21, %s28
      %p135 = scmp.eq.s32.totalorder %s134, 0
      %s137 = sadd.s32 %s136, 1
      %s138 = scalar_select %p135, %s136, %s137
      %p141 = pneg %p135
      %p142 = scmp.eq.s32.totalorder %s13, 3
      %p143 = por %p141, %p142
      %p144 = scmp.ne.s32.totalorder %s136, %s139
      %p145 = scmp.eq.s32.totalorder %s13, 0
      %p146 = por %p144, %p145
      %p147 = scmp.ne.s32.totalorder %s136, %s139
      %p148 = scmp.eq.s32.totalorder %s18, 3
      %p149 = por %p147, %p148
      %p150 = scmp.ne.s32.totalorder %s139, %s140
      %p151 = scmp.eq.s32.totalorder %s18, 0
      %p152 = por %p150, %p151
      %p153 = scmp.ne.s32.totalorder %s139, %s140
      %p154 = scmp.eq.s32.totalorder %s19, 3
      %p155 = por %p153, %p154
      %p157 = scmp.ne.s32.totalorder %s140, %s156
      %p158 = scmp.eq.s32.totalorder %s19, 0
      %p159 = por %p157, %p158
      %s161 = sadd.s32 %s160, 1
      %p164 = scmp.eq.s32.totalorder %s13, 3
      %p165 = scmp.ne.s32.totalorder %s160, %s162
      %p166 = scmp.eq.s32.totalorder %s13, 0
      %p167 = por %p165, %p166
      %p168 = scmp.ne.s32.totalorder %s160, %s162
      %p169 = scmp.eq.s32.totalorder %s18, 3
      %p170 = por %p168, %p169
      %p171 = scmp.ne.s32.totalorder %s162, %s163
      %p172 = scmp.eq.s32.totalorder %s18, 0
      %p173 = por %p171, %p172
      %p174 = scmp.ne.s32.totalorder %s162, %s163
      %p175 = scmp.eq.s32.totalorder %s19, 3
      %p176 = por %p174, %p175
      %p178 = scmp.ne.s32.totalorder %s163, %s177
      %p179 = scmp.eq.s32.totalorder %s19, 0
      %p180 = por %p178, %p179
      %s181 = ssub.s32 %s20, %s32
      %p182 = scmp.eq.s32.totalorder %s181, 0
      %s184 = sadd.s32 %s183, 1
      %s185 = scalar_select %p182, %s183, %s184
      %p188 = pneg %p182
      %p189 = scmp.eq.s32.totalorder %s13, 3
      %p190 = por %p188, %p189
      %p191 = scmp.ne.s32.totalorder %s183, %s186
      %p192 = scmp.eq.s32.totalorder %s13, 0
      %p193 = por %p191, %p192
      %p194 = scmp.ne.s32.totalorder %s183, %s186
      %p195 = scmp.eq.s32.totalorder %s18, 3
      %p196 = por %p194, %p195
      %p197 = scmp.ne.s32.totalorder %s186, %s187
      %p198 = scmp.eq.s32.totalorder %s18, 0
      %p199 = por %p197, %p198
      %p200 = scmp.ne.s32.totalorder %s186, %s187
      %p201 = scmp.eq.s32.totalorder %s19, 3
      %p202 = por %p200, %p201
      %p204 = scmp.ne.s32.totalorder %s187, %s203
      %p205 = scmp.eq.s32.totalorder %s19, 0
      %p206 = por %p204, %p205
      %p207 = scmp.le.s32.totalorder 1, %s13
      %p208 = scmp.lt.s32.totalorder %s13, 5
      %p209 = pnand %p207, %p208
      %p210 = pneg %p209
      // Predicated region
      $region9: #{tpu_custom_call.1} parent=5 // pred_check
        _
      $region10: #{tpu_custom_call.1} parent=5 // pred_check_branch
        %212 = sbr.rel (%p209) target = $region12
      $region11: #{tpu_custom_call.1} parent=5 // pred_region
        %s213 = ssub.s32 %s13, 1
        // Predicated region
        $region13: #{tpu_custom_call.1} parent=11 // pred_check
          %p214 = pneg %p100
        $region14: #{tpu_custom_call.1} parent=11 // pred_check_branch
          %216 = sbr.rel (%p214) target = $region16
        $region15: #{tpu_custom_call.1} parent=11 // pred_region
          _
        $region16: #{tpu_custom_call.1} parent=11 // pred_fallthru
          _
        // Predicated region
        $region17: #{tpu_custom_call.1} parent=11 // pred_check
          %p217 = pneg %p173
        $region18: #{tpu_custom_call.1} parent=11 // pred_check_branch
          %219 = sbr.rel (%p217) target = $region20
        $region19: #{tpu_custom_call.1} parent=11 // pred_region
          _
        $region20: #{tpu_custom_call.1} parent=11 // pred_fallthru
          _
      $region12: #{tpu_custom_call.1} parent=5 // pred_fallthru
        _
      %p220 = scmp.lt.s32.totalorder %s13, 4
      // Predicated region
      $region21: #{tpu_custom_call.1} parent=5 // pred_check
        %p221 = pneg %p220
      $region22: #{tpu_custom_call.1} parent=5 // pred_check_branch
        %223 = sbr.rel (%p221) target = $region24
      $region23: #{tpu_custom_call.1} parent=5 // pred_region
        // Predicated region
        $region25: #{tpu_custom_call.1} parent=23 // pred_check
          %p224 = pneg %p47
        $region26: #{tpu_custom_call.1} parent=23 // pred_check_branch
          %226 = sbr.rel (%p224) target = $region28
        $region27: #{tpu_custom_call.1} parent=23 // pred_region
          %p227 = scmp.lt.s32.totalorder %s20, 0
          %s228 = scalar_select %p227, %s20, 0
          %p229 = scmp.lt.s32.totalorder %s21, 3
          %s230 = scalar_select %p229, %s21, 3
          %s231 = smul.addr %s228, 4
          %s232 = sadd.s32 %s230, %s231
          %s233 = smul.addr %s232, 8
          %s234 = scalar_lea.vmem %s0, %s233
        $region28: #{tpu_custom_call.1} parent=23 // pred_fallthru
          _
        // Predicated region
        $region29: #{tpu_custom_call.1} parent=23 // pred_check
          %p235 = pneg %p73
        $region30: #{tpu_custom_call.1} parent=23 // pred_check_branch
          %237 = sbr.rel (%p235) target = $region32
        $region31: #{tpu_custom_call.1} parent=23 // pred_region
          %s238 = smul.u32 16, %s21
          %p239 = scmp.lt.s32.totalorder %s238, 63
          %s240 = scalar_select %p239, %s238, 63
          %s241 = smul.addr %s240, 8
          %s242 = scalar_lea.vmem %s1, %s241
          %s243 = smul.u32 16, %s21
        $region32: #{tpu_custom_call.1} parent=23 // pred_fallthru
          _
        // Predicated region
        $region33: #{tpu_custom_call.1} parent=23 // pred_check
          %p244 = pneg %p120
        $region34: #{tpu_custom_call.1} parent=23 // pred_check_branch
          %246 = sbr.rel (%p244) target = $region36
        $region35: #{tpu_custom_call.1} parent=23 // pred_region
          %s247 = smul.u32 16, %s21
          %p248 = scmp.lt.s32.totalorder %s247, 63
          %s249 = scalar_select %p248, %s247, 63
          %s250 = smul.addr %s249, 8
          %s251 = scalar_lea.vmem %s3, %s250
          %s252 = smul.u32 16, %s21
        $region36: #{tpu_custom_call.1} parent=23 // pred_fallthru
          _
        // Predicated region
        $region37: #{tpu_custom_call.1} parent=23 // pred_check
          %p253 = pneg %p146
        $region38: #{tpu_custom_call.1} parent=23 // pred_check_branch
          %255 = sbr.rel (%p253) target = $region40
        $region39: #{tpu_custom_call.1} parent=23 // pred_region
          %s256 = smul.u32 16, %s21
          %p257 = scmp.lt.s32.totalorder %s256, 63
          %s258 = scalar_select %p257, %s256, 63
          %s259 = smul.addr %s258, 8
          %s260 = scalar_lea.vmem %s4, %s259
          %s261 = smul.u32 16, %s21
        $region40: #{tpu_custom_call.1} parent=23 // pred_fallthru
          _
      $region24: #{tpu_custom_call.1} parent=5 // pred_fallthru
        _
      %p262 = scmp.le.s32.totalorder 1, %s13
      %p263 = scmp.lt.s32.totalorder %s13, 5
      %p264 = pnand %p262, %p263
      %p265 = pneg %p264
      // Predicated region
      $region41: #{tpu_custom_call.1} parent=5 // pred_check
        _
      $region42: #{tpu_custom_call.1} parent=5 // pred_check_branch
        %267 = sbr.rel (%p264) target = $region44
      $region43: #{tpu_custom_call.1} parent=5 // pred_region
        %s268 = ssub.s32 %s13, 1
        %p269 = scmp.lt.s32.totalorder %s22, 0
        %s270 = scalar_select %p269, %s22, 0
        %p271 = scmp.lt.s32.totalorder %s23, 3
        %s272 = scalar_select %p271, %s23, 3
        %s273 = smul.addr %s270, 4
        %s274 = sadd.s32 %s272, %s273
        %s275 = smul.addr %s274, 8
        %s276 = scalar_lea.vmem %s0, %s275
        %p277 = pneg %p53
        %p278 = pneg %p50
        %s279 = smul.u32 16, %s23
        %p280 = scmp.lt.s32.totalorder %s279, 63
        %s281 = scalar_select %p280, %s279, 63
        %s282 = smul.addr %s281, 8
        %s283 = scalar_lea.vmem %s1, %s282
        %p284 = pneg %p79
        %p285 = pneg %p76
        %p286 = pneg %p100
        %p287 = pneg %p97
        %s288 = smul.u32 16, %s23
        %p289 = scmp.lt.s32.totalorder %s288, 63
        %s290 = scalar_select %p289, %s288, 63
        %s291 = smul.addr %s290, 8
        %s292 = scalar_lea.vmem %s3, %s291
        %p293 = pneg %p126
        %p294 = pneg %p123
        %s295 = smul.u32 16, %s23
        %p296 = scmp.lt.s32.totalorder %s295, 63
        %s297 = scalar_select %p296, %s295, 63
        %s298 = smul.addr %s297, 8
        %s299 = scalar_lea.vmem %s4, %s298
        %p300 = pneg %p152
        %p301 = pneg %p149
        %p302 = pneg %p173
        %p303 = pneg %p170
        %p304 = pneg %p199
        %p305 = pneg %p196
        %p306 = scmp.lt.s32.totalorder %s22, 0
        %s307 = scalar_select %p306, %s22, 0
        %p308 = scmp.lt.s32.totalorder %s23, 3
        %s309 = scalar_select %p308, %s23, 3
        %s310 = smul.addr %s307, 4
        %s311 = sadd.s32 %s309, %s310
        %s312 = smul.addr %s311, 8
        %s313 = scalar_lea.vmem %s0, %s312
        %s314 = smul.u32 16, %s23
        %p315 = scmp.lt.s32.totalorder %s314, 63
        %s316 = scalar_select %p315, %s314, 63
        %s317 = smul.addr %s316, 8
        %s318 = scalar_lea.vmem %s1, %s317
        %s319 = smul.u32 16, %s23
        %s320 = smul.u32 16, %s23
        %p321 = scmp.lt.s32.totalorder %s320, 63
        %s322 = scalar_select %p321, %s320, 63
        %s323 = smul.addr %s322, 8
        %s324 = scalar_lea.vmem %s3, %s323
        %s325 = smul.u32 16, %s23
        %s326 = smul.u32 16, %s23
        %p327 = scmp.lt.s32.totalorder %s326, 63
        %s328 = scalar_select %p327, %s326, 63
        %s329 = smul.addr %s328, 8
        %s330 = scalar_lea.vmem %s4, %s329
        %s331 = smul.u32 16, %s23
        %p332 = scmp.eq.s32.totalorder %s23, 0
        // Predicated region
        $region45: #{tpu_custom_call.1} parent=43 // pred_check
          %p333 = pneg %p332
        $region46: #{tpu_custom_call.1} parent=43 // pred_check_branch
          %335 = sbr.rel (%p333) target = $region48
        $region47: #{tpu_custom_call.1} parent=43 // pred_region
          %336 = vst [vmem:[#allocation2] sm:$0xff] 0.0
        $region48: #{tpu_custom_call.1} parent=43 // pred_fallthru
          _
        %v337 = vld [vmem:[%s324] sm:$0xff]
        %v338 = vld [vmem:[%s324 + $0x8] sm:$0xff]
        %v339 = vld [vmem:[%s324 + $0x10] sm:$0xff]
        %v340 = vld [vmem:[%s324 + $0x18] sm:$0xff]
        %v341 = vld [vmem:[%s324 + $0x20] sm:$0xff]
        %v342 = vld [vmem:[%s324 + $0x28] sm:$0xff]
        %v343 = vld [vmem:[%s324 + $0x30] sm:$0xff]
        %v344 = vld [vmem:[%s324 + $0x38] sm:$0xff]
        %v345 = vld [vmem:[%s324 + $0x40] sm:$0xff]
        %v346 = vld [vmem:[%s324 + $0x48] sm:$0xff]
        %v347 = vld [vmem:[%s324 + $0x50] sm:$0xff]
        %v348 = vld [vmem:[%s324 + $0x58] sm:$0xff]
        %v349 = vld [vmem:[%s324 + $0x60] sm:$0xff]
        %v350 = vld [vmem:[%s324 + $0x68] sm:$0xff]
        %v351 = vld [vmem:[%s324 + $0x70] sm:$0xff]
        %v352 = vld [vmem:[%s324 + $0x78] sm:$0xff]
        %v353 = vld [vmem:[%s2] sm:$0xf]
        %vm354 = vcmask 31744
        %v356 = vsel %vm354, %v337, 0
        %v359 = vsel %vm354, %v338, 0
        %v362 = vsel %vm354, %v339, 0
        %v365 = vsel %vm354, %v340, 0
        %v368 = vsel %vm354, %v341, 0
        %v371 = vsel %vm354, %v342, 0
        %v374 = vsel %vm354, %v343, 0
        %v377 = vsel %vm354, %v344, 0
        %v380 = vsel %vm354, %v345, 0
        %v383 = vsel %vm354, %v346, 0
        %v386 = vsel %vm354, %v347, 0
        %v389 = vsel %vm354, %v348, 0
        %v392 = vsel %vm354, %v349, 0
        %v395 = vsel %vm354, %v350, 0
        %v398 = vsel %vm354, %v351, 0
        %v401 = vsel %vm354, %v352, 0
        %vm403 = vcmask 1043456
        %v405 = vsel %vm403, %v353, 0
        %407 = vmatpush.msra.mxu0 0.0
        %408 = vmatpush.msra.mxu0 0.0
        %409 = vmatpush.msra.mxu0 0.0
        %410 = vmatpush.msra.mxu0 0.0
        %411 = vmatpush.msra.mxu0 0.0
        %412 = vmatpush.msra.mxu0 0.0
        %413 = vmatpush.msra.mxu0 0.0
        %414 = vmatpush.msra.mxu0 0.0
        %415 = vmatpush.msra.mxu0 0.0
        %416 = vmatpush.msra.mxu0 0.0
        %417 = vmatpush.msra.mxu0 0.0
        %418 = vmatpush.msra.mxu0 0.0
        %419 = vmatpush.msra.mxu0 0.0
        %420 = vmatpush.msra.mxu0 0.0
        %421 = vmatpush.msra.mxu0 0.0
        %422 = vmatpush.msra.mxu0 %v405
        %423 = vmatmul.f32.gmra.mxu0 %v356
        %v424 = vpop.f32.mrf.mxu0
        %v425 = vadd.f32 0.0, %v424
        %426 = vmatmul.f32.gmra.mxu0 %v359
        %v427 = vpop.f32.mrf.mxu0
        %v428 = vadd.f32 0.0, %v427
        %429 = vmatmul.f32.gmra.mxu0 %v362
        %v430 = vpop.f32.mrf.mxu0
        %v431 = vadd.f32 0.0, %v430
        %432 = vmatmul.f32.gmra.mxu0 %v365
        %v433 = vpop.f32.mrf.mxu0
        %v434 = vadd.f32 0.0, %v433
        %435 = vmatmul.f32.gmra.mxu0 %v368
        %v436 = vpop.f32.mrf.mxu0
        %v437 = vadd.f32 0.0, %v436
        %438 = vmatmul.f32.gmra.mxu0 %v371
        %v439 = vpop.f32.mrf.mxu0
        %v440 = vadd.f32 0.0, %v439
        %441 = vmatmul.f32.gmra.mxu0 %v374
        %v442 = vpop.f32.mrf.mxu0
        %v443 = vadd.f32 0.0, %v442
        %444 = vmatmul.f32.gmra.mxu0 %v377
        %v445 = vpop.f32.mrf.mxu0
        %v446 = vadd.f32 0.0, %v445
        %447 = vmatmul.f32.gmra.mxu0 %v380
        %v448 = vpop.f32.mrf.mxu0
        %v449 = vadd.f32 0.0, %v448
        %450 = vmatmul.f32.gmra.mxu0 %v383
        %v451 = vpop.f32.mrf.mxu0
        %v452 = vadd.f32 0.0, %v451
        %453 = vmatmul.f32.gmra.mxu0 %v386
        %v454 = vpop.f32.mrf.mxu0
        %v455 = vadd.f32 0.0, %v454
        %456 = vmatmul.f32.gmra.mxu0 %v389
        %v457 = vpop.f32.mrf.mxu0
        %v458 = vadd.f32 0.0, %v457
        %459 = vmatmul.f32.gmra.mxu0 %v392
        %v460 = vpop.f32.mrf.mxu0
        %v461 = vadd.f32 0.0, %v460
        %462 = vmatmul.f32.gmra.mxu0 %v395
        %v463 = vpop.f32.mrf.mxu0
        %v464 = vadd.f32 0.0, %v463
        %465 = vmatmul.f32.gmra.mxu0 %v398
        %v466 = vpop.f32.mrf.mxu0
        %v467 = vadd.f32 0.0, %v466
        %468 = vmatmul.f32.gmra.mxu0 %v401
        %v469 = vpop.f32.mrf.mxu0
        %v470 = vadd.f32 0.0, %v469
        %471 = vdwg.mxu0
        %v472 = vld [vmem:[%s318] sm:$0xff]
        %v473 = vld [vmem:[%s318 + $0x8] sm:$0xff]
        %v474 = vld [vmem:[%s318 + $0x10] sm:$0xff]
        %v475 = vld [vmem:[%s318 + $0x18] sm:$0xff]
        %v476 = vld [vmem:[%s318 + $0x20] sm:$0xff]
        %v477 = vld [vmem:[%s318 + $0x28] sm:$0xff]
        %v478 = vld [vmem:[%s318 + $0x30] sm:$0xff]
        %v479 = vld [vmem:[%s318 + $0x38] sm:$0xff]
        %v480 = vld [vmem:[%s318 + $0x40] sm:$0xff]
        %v481 = vld [vmem:[%s318 + $0x48] sm:$0xff]
        %v482 = vld [vmem:[%s318 + $0x50] sm:$0xff]
        %v483 = vld [vmem:[%s318 + $0x58] sm:$0xff]
        %v484 = vld [vmem:[%s318 + $0x60] sm:$0xff]
        %v485 = vld [vmem:[%s318 + $0x68] sm:$0xff]
        %v486 = vld [vmem:[%s318 + $0x70] sm:$0xff]
        %v487 = vld [vmem:[%s318 + $0x78] sm:$0xff]
        %v488 = vadd.f32 %v472, %v425
        %v489 = vadd.f32 %v473, %v428
        %v490 = vadd.f32 %v474, %v431
        %v491 = vadd.f32 %v475, %v434
        %v492 = vadd.f32 %v476, %v437
        %v493 = vadd.f32 %v477, %v440
        %v494 = vadd.f32 %v478, %v443
        %v495 = vadd.f32 %v479, %v446
        %v496 = vadd.f32 %v480, %v449
        %v497 = vadd.f32 %v481, %v452
        %v498 = vadd.f32 %v482, %v455
        %v499 = vadd.f32 %v483, %v458
        %v500 = vadd.f32 %v484, %v461
        %v501 = vadd.f32 %v485, %v464
        %v502 = vadd.f32 %v486, %v467
        %v503 = vadd.f32 %v487, %v470
        %v504 = vmul.f32 %v488, %v488
        %v505 = vmul.f32 %v489, %v489
        %v506 = vmul.f32 %v490, %v490
        %v507 = vmul.f32 %v491, %v491
        %v508 = vmul.f32 %v492, %v492
        %v509 = vmul.f32 %v493, %v493
        %v510 = vmul.f32 %v494, %v494
        %v511 = vmul.f32 %v495, %v495
        %v512 = vmul.f32 %v496, %v496
        %v513 = vmul.f32 %v497, %v497
        %v514 = vmul.f32 %v498, %v498
        %v515 = vmul.f32 %v499, %v499
        %v516 = vmul.f32 %v500, %v500
        %v517 = vmul.f32 %v501, %v501
        %v518 = vmul.f32 %v502, %v502
        %v519 = vmul.f32 %v503, %v503
        %520 = vadd.xlane.f32.xlu0 %v504
        %v521 = vpop.xlane.xlu0 %520
        %522 = vadd.xlane.f32.xlu0 %v505
        %v523 = vpop.xlane.xlu0 %522
        %524 = vadd.xlane.f32.xlu0 %v506
        %v525 = vpop.xlane.xlu0 %524
        %526 = vadd.xlane.f32.xlu0 %v507
        %v527 = vpop.xlane.xlu0 %526
        %528 = vadd.xlane.f32.xlu0 %v508
        %v529 = vpop.xlane.xlu0 %528
        %530 = vadd.xlane.f32.xlu0 %v509
        %v531 = vpop.xlane.xlu0 %530
        %532 = vadd.xlane.f32.xlu0 %v510
        %v533 = vpop.xlane.xlu0 %532
        %534 = vadd.xlane.f32.xlu0 %v511
        %v535 = vpop.xlane.xlu0 %534
        %536 = vadd.xlane.f32.xlu0 %v512
        %v537 = vpop.xlane.xlu0 %536
        %538 = vadd.xlane.f32.xlu0 %v513
        %v539 = vpop.xlane.xlu0 %538
        %540 = vadd.xlane.f32.xlu0 %v514
        %v541 = vpop.xlane.xlu0 %540
        %542 = vadd.xlane.f32.xlu0 %v515
        %v543 = vpop.xlane.xlu0 %542
        %544 = vadd.xlane.f32.xlu0 %v516
        %v545 = vpop.xlane.xlu0 %544
        %546 = vadd.xlane.f32.xlu0 %v517
        %v547 = vpop.xlane.xlu0 %546
        %548 = vadd.xlane.f32.xlu0 %v518
        %v549 = vpop.xlane.xlu0 %548
        %550 = vadd.xlane.f32.xlu0 %v519
        %v551 = vpop.xlane.xlu0 %550
        %v552 = vrsqrt.pop %v521
        %v553 = vmul.f32 %v552, %v521
        %v554 = vmul.f32 %v553, %v552
        %v555 = vmul.f32 0.5, %v554
        %v556 = vsub.f32 1.5, %v555
        %v557 = vmul.f32 %v552, %v556
        %vm558 = vweird.f32 %v521
        %vm559 = vweird.f32 %v552
        %vm560 = vmor %vm558, %vm559
        %v561 = vsel %vm560, %v552, %v557
        %v562 = vrsqrt.pop %v523
        %v563 = vmul.f32 %v562, %v523
        %v564 = vmul.f32 %v563, %v562
        %v565 = vmul.f32 0.5, %v564
        %v566 = vsub.f32 1.5, %v565
        %v567 = vmul.f32 %v562, %v566
        %vm568 = vweird.f32 %v523
        %vm569 = vweird.f32 %v562
        %vm570 = vmor %vm568, %vm569
        %v571 = vsel %vm570, %v562, %v567
        %v572 = vrsqrt.pop %v525
        %v573 = vmul.f32 %v572, %v525
        %v574 = vmul.f32 %v573, %v572
        %v575 = vmul.f32 0.5, %v574
        %v576 = vsub.f32 1.5, %v575
        %v577 = vmul.f32 %v572, %v576
        %vm578 = vweird.f32 %v525
        %vm579 = vweird.f32 %v572
        %vm580 = vmor %vm578, %vm579
        %v581 = vsel %vm580, %v572, %v577
        %v582 = vrsqrt.pop %v527
        %v583 = vmul.f32 %v582, %v527
        %v584 = vmul.f32 %v583, %v582
        %v585 = vmul.f32 0.5, %v584
        %v586 = vsub.f32 1.5, %v585
        %v587 = vmul.f32 %v582, %v586
        %vm588 = vweird.f32 %v527
        %vm589 = vweird.f32 %v582
        %vm590 = vmor %vm588, %vm589
        %v591 = vsel %vm590, %v582, %v587
        %v592 = vrsqrt.pop %v529
        %v593 = vmul.f32 %v592, %v529
        %v594 = vmul.f32 %v593, %v592
        %v595 = vmul.f32 0.5, %v594
        %v596 = vsub.f32 1.5, %v595
        %v597 = vmul.f32 %v592, %v596
        %vm598 = vweird.f32 %v529
        %vm599 = vweird.f32 %v592
        %vm600 = vmor %vm598, %vm599
        %v601 = vsel %vm600, %v592, %v597
        %v602 = vrsqrt.pop %v531
        %v603 = vmul.f32 %v602, %v531
        %v604 = vmul.f32 %v603, %v602
        %v605 = vmul.f32 0.5, %v604
        %v606 = vsub.f32 1.5, %v605
        %v607 = vmul.f32 %v602, %v606
        %vm608 = vweird.f32 %v531
        %vm609 = vweird.f32 %v602
        %vm610 = vmor %vm608, %vm609
        %v611 = vsel %vm610, %v602, %v607
        %v612 = vrsqrt.pop %v533
        %v613 = vmul.f32 %v612, %v533
        %v614 = vmul.f32 %v613, %v612
        %v615 = vmul.f32 0.5, %v614
        %v616 = vsub.f32 1.5, %v615
        %v617 = vmul.f32 %v612, %v616
        %vm618 = vweird.f32 %v533
        %vm619 = vweird.f32 %v612
        %vm620 = vmor %vm618, %vm619
        %v621 = vsel %vm620, %v612, %v617
        %v622 = vrsqrt.pop %v535
        %v623 = vmul.f32 %v622, %v535
        %v624 = vmul.f32 %v623, %v622
        %v625 = vmul.f32 0.5, %v624
        %v626 = vsub.f32 1.5, %v625
        %v627 = vmul.f32 %v622, %v626
        %vm628 = vweird.f32 %v535
        %vm629 = vweird.f32 %v622
        %vm630 = vmor %vm628, %vm629
        %v631 = vsel %vm630, %v622, %v627
        %v632 = vrsqrt.pop %v537
        %v633 = vmul.f32 %v632, %v537
        %v634 = vmul.f32 %v633, %v632
        %v635 = vmul.f32 0.5, %v634
        %v636 = vsub.f32 1.5, %v635
        %v637 = vmul.f32 %v632, %v636
        %vm638 = vweird.f32 %v537
        %vm639 = vweird.f32 %v632
        %vm640 = vmor %vm638, %vm639
        %v641 = vsel %vm640, %v632, %v637
        %v642 = vrsqrt.pop %v539
        %v643 = vmul.f32 %v642, %v539
        %v644 = vmul.f32 %v643, %v642
        %v645 = vmul.f32 0.5, %v644
        %v646 = vsub.f32 1.5, %v645
        %v647 = vmul.f32 %v642, %v646
        %vm648 = vweird.f32 %v539
        %vm649 = vweird.f32 %v642
        %vm650 = vmor %vm648, %vm649
        %v651 = vsel %vm650, %v642, %v647
        %v652 = vrsqrt.pop %v541
        %v653 = vmul.f32 %v652, %v541
        %v654 = vmul.f32 %v653, %v652
        %v655 = vmul.f32 0.5, %v654
        %v656 = vsub.f32 1.5, %v655
        %v657 = vmul.f32 %v652, %v656
        %vm658 = vweird.f32 %v541
        %vm659 = vweird.f32 %v652
        %vm660 = vmor %vm658, %vm659
        %v661 = vsel %vm660, %v652, %v657
        %v662 = vrsqrt.pop %v543
        %v663 = vmul.f32 %v662, %v543
        %v664 = vmul.f32 %v663, %v662
        %v665 = vmul.f32 0.5, %v664
        %v666 = vsub.f32 1.5, %v665
        %v667 = vmul.f32 %v662, %v666
        %vm668 = vweird.f32 %v543
        %vm669 = vweird.f32 %v662
        %vm670 = vmor %vm668, %vm669
        %v671 = vsel %vm670, %v662, %v667
        %v672 = vrsqrt.pop %v545
        %v673 = vmul.f32 %v672, %v545
        %v674 = vmul.f32 %v673, %v672
        %v675 = vmul.f32 0.5, %v674
        %v676 = vsub.f32 1.5, %v675
        %v677 = vmul.f32 %v672, %v676
        %vm678 = vweird.f32 %v545
        %vm679 = vweird.f32 %v672
        %vm680 = vmor %vm678, %vm679
        %v681 = vsel %vm680, %v672, %v677
        %v682 = vrsqrt.pop %v547
        %v683 = vmul.f32 %v682, %v547
        %v684 = vmul.f32 %v683, %v682
        %v685 = vmul.f32 0.5, %v684
        %v686 = vsub.f32 1.5, %v685
        %v687 = vmul.f32 %v682, %v686
        %vm688 = vweird.f32 %v547
        %vm689 = vweird.f32 %v682
        %vm690 = vmor %vm688, %vm689
        %v691 = vsel %vm690, %v682, %v687
        %v692 = vrsqrt.pop %v549
        %v693 = vmul.f32 %v692, %v549
        %v694 = vmul.f32 %v693, %v692
        %v695 = vmul.f32 0.5, %v694
        %v696 = vsub.f32 1.5, %v695
        %v697 = vmul.f32 %v692, %v696
        %vm698 = vweird.f32 %v549
        %vm699 = vweird.f32 %v692
        %vm700 = vmor %vm698, %vm699
        %v701 = vsel %vm700, %v692, %v697
        %v702 = vrsqrt.pop %v551
        %v703 = vmul.f32 %v702, %v551
        %v704 = vmul.f32 %v703, %v702
        %v705 = vmul.f32 0.5, %v704
        %v706 = vsub.f32 1.5, %v705
        %v707 = vmul.f32 %v702, %v706
        %vm708 = vweird.f32 %v551
        %vm709 = vweird.f32 %v702
        %vm710 = vmor %vm708, %vm709
        %v711 = vsel %vm710, %v702, %v707
        %v712 = vmul.f32 %v521, 0.5
        %v713 = vmul.f32 %v523, 0.5
        %v714 = vmul.f32 %v525, 0.5
        %v715 = vmul.f32 %v527, 0.5
        %v716 = vmul.f32 %v529, 0.5
        %v717 = vmul.f32 %v531, 0.5
        %v718 = vmul.f32 %v533, 0.5
        %v719 = vmul.f32 %v535, 0.5
        %v720 = vmul.f32 %v537, 0.5
        %v721 = vmul.f32 %v539, 0.5
        %v722 = vmul.f32 %v541, 0.5
        %v723 = vmul.f32 %v543, 0.5
        %v724 = vmul.f32 %v545, 0.5
        %v725 = vmul.f32 %v547, 0.5
        %v726 = vmul.f32 %v549, 0.5
        %v727 = vmul.f32 %v551, 0.5
        %v728 = vmul.f32 %v712, %v561
        %v729 = vmul.f32 %v713, %v571
        %v730 = vmul.f32 %v714, %v581
        %v731 = vmul.f32 %v715, %v591
        %v732 = vmul.f32 %v716, %v601
        %v733 = vmul.f32 %v717, %v611
        %v734 = vmul.f32 %v718, %v621
        %v735 = vmul.f32 %v719, %v631
        %v736 = vmul.f32 %v720, %v641
        %v737 = vmul.f32 %v721, %v651
        %v738 = vmul.f32 %v722, %v661
        %v739 = vmul.f32 %v723, %v671
        %v740 = vmul.f32 %v724, %v681
        %v741 = vmul.f32 %v725, %v691
        %v742 = vmul.f32 %v726, %v701
        %v743 = vmul.f32 %v727, %v711
        %v744 = vmul.f32 %v728, %v561
        %v745 = vmul.f32 %v729, %v571
        %v746 = vmul.f32 %v730, %v581
        %v747 = vmul.f32 %v731, %v591
        %v748 = vmul.f32 %v732, %v601
        %v749 = vmul.f32 %v733, %v611
        %v750 = vmul.f32 %v734, %v621
        %v751 = vmul.f32 %v735, %v631
        %v752 = vmul.f32 %v736, %v641
        %v753 = vmul.f32 %v737, %v651
        %v754 = vmul.f32 %v738, %v661
        %v755 = vmul.f32 %v739, %v671
        %v756 = vmul.f32 %v740, %v681
        %v757 = vmul.f32 %v741, %v691
        %v758 = vmul.f32 %v742, %v701
        %v759 = vmul.f32 %v743, %v711
        %v760 = vsub.f32 1.5, %v744
        %v761 = vsub.f32 1.5, %v745
        %v762 = vsub.f32 1.5, %v746
        %v763 = vsub.f32 1.5, %v747
        %v764 = vsub.f32 1.5, %v748
        %v765 = vsub.f32 1.5, %v749
        %v766 = vsub.f32 1.5, %v750
        %v767 = vsub.f32 1.5, %v751
        %v768 = vsub.f32 1.5, %v752
        %v769 = vsub.f32 1.5, %v753
        %v770 = vsub.f32 1.5, %v754
        %v771 = vsub.f32 1.5, %v755
        %v772 = vsub.f32 1.5, %v756
        %v773 = vsub.f32 1.5, %v757
        %v774 = vsub.f32 1.5, %v758
        %v775 = vsub.f32 1.5, %v759
        %v776 = vmul.f32 %v561, %v760
        %v777 = vmul.f32 %v571, %v761
        %v778 = vmul.f32 %v581, %v762
        %v779 = vmul.f32 %v591, %v763
        %v780 = vmul.f32 %v601, %v764
        %v781 = vmul.f32 %v611, %v765
        %v782 = vmul.f32 %v621, %v766
        %v783 = vmul.f32 %v631, %v767
        %v784 = vmul.f32 %v641, %v768
        %v785 = vmul.f32 %v651, %v769
        %v786 = vmul.f32 %v661, %v770
        %v787 = vmul.f32 %v671, %v771
        %v788 = vmul.f32 %v681, %v772
        %v789 = vmul.f32 %v691, %v773
        %v790 = vmul.f32 %v701, %v774
        %v791 = vmul.f32 %v711, %v775
        %v792 = vld [vmem:[%s330] sm:$0xff]
        %v793 = vld [vmem:[%s330 + $0x8] sm:$0xff]
        %v794 = vld [vmem:[%s330 + $0x10] sm:$0xff]
        %v795 = vld [vmem:[%s330 + $0x18] sm:$0xff]
        %v796 = vld [vmem:[%s330 + $0x20] sm:$0xff]
        %v797 = vld [vmem:[%s330 + $0x28] sm:$0xff]
        %v798 = vld [vmem:[%s330 + $0x30] sm:$0xff]
        %v799 = vld [vmem:[%s330 + $0x38] sm:$0xff]
        %v800 = vld [vmem:[%s330 + $0x40] sm:$0xff]
        %v801 = vld [vmem:[%s330 + $0x48] sm:$0xff]
        %v802 = vld [vmem:[%s330 + $0x50] sm:$0xff]
        %v803 = vld [vmem:[%s330 + $0x58] sm:$0xff]
        %v804 = vld [vmem:[%s330 + $0x60] sm:$0xff]
        %v805 = vld [vmem:[%s330 + $0x68] sm:$0xff]
        %v806 = vld [vmem:[%s330 + $0x70] sm:$0xff]
        %v807 = vld [vmem:[%s330 + $0x78] sm:$0xff]
        %v808 = vmul.f32 %v792, %v776
        %v809 = vmul.f32 %v793, %v777
        %v810 = vmul.f32 %v794, %v778
        %v811 = vmul.f32 %v795, %v779
        %v812 = vmul.f32 %v796, %v780
        %v813 = vmul.f32 %v797, %v781
        %v814 = vmul.f32 %v798, %v782
        %v815 = vmul.f32 %v799, %v783
        %v816 = vmul.f32 %v800, %v784
        %v817 = vmul.f32 %v801, %v785
        %v818 = vmul.f32 %v802, %v786
        %v819 = vmul.f32 %v803, %v787
        %v820 = vmul.f32 %v804, %v788
        %v821 = vmul.f32 %v805, %v789
        %v822 = vmul.f32 %v806, %v790
        %v823 = vmul.f32 %v807, %v791
        %825 = vset.pattern.permute.xlu0 0
        %826 = vperm.xlu0 %825, %v808
        %v827 = vpop.permute.xlu0 %826
        %830 = vset.pattern.permute.xlu0 0
        %831 = vperm.xlu0 %830, %v809
        %v832 = vpop.permute.xlu0 %831
        %835 = vset.pattern.permute.xlu0 0
        %836 = vperm.xlu0 %835, %v810
        %v837 = vpop.permute.xlu0 %836
        %840 = vset.pattern.permute.xlu0 0
        %841 = vperm.xlu0 %840, %v811
        %v842 = vpop.permute.xlu0 %841
        %845 = vset.pattern.permute.xlu0 0
        %846 = vperm.xlu0 %845, %v812
        %v847 = vpop.permute.xlu0 %846
        %850 = vset.pattern.permute.xlu0 0
        %851 = vperm.xlu0 %850, %v813
        %v852 = vpop.permute.xlu0 %851
        %855 = vset.pattern.permute.xlu0 0
        %856 = vperm.xlu0 %855, %v814
        %v857 = vpop.permute.xlu0 %856
        %860 = vset.pattern.permute.xlu0 0
        %861 = vperm.xlu0 %860, %v815
        %v862 = vpop.permute.xlu0 %861
        %865 = vset.pattern.permute.xlu0 0
        %866 = vperm.xlu0 %865, %v816
        %v867 = vpop.permute.xlu0 %866
        %870 = vset.pattern.permute.xlu0 0
        %871 = vperm.xlu0 %870, %v817
        %v872 = vpop.permute.xlu0 %871
        %875 = vset.pattern.permute.xlu0 0
        %876 = vperm.xlu0 %875, %v818
        %v877 = vpop.permute.xlu0 %876
        %880 = vset.pattern.permute.xlu0 0
        %881 = vperm.xlu0 %880, %v819
        %v882 = vpop.permute.xlu0 %881
        %885 = vset.pattern.permute.xlu0 0
        %886 = vperm.xlu0 %885, %v820
        %v887 = vpop.permute.xlu0 %886
        %890 = vset.pattern.permute.xlu0 0
        %891 = vperm.xlu0 %890, %v821
        %v892 = vpop.permute.xlu0 %891
        %895 = vset.pattern.permute.xlu0 0
        %896 = vperm.xlu0 %895, %v822
        %v897 = vpop.permute.xlu0 %896
        %900 = vset.pattern.permute.xlu0 0
        %901 = vperm.xlu0 %900, %v823
        %v902 = vpop.permute.xlu0 %901
        %v904 = vmul.f32 %v827, %v488
        %v905 = vmul.f32 %v832, %v489
        %v906 = vmul.f32 %v837, %v490
        %v907 = vmul.f32 %v842, %v491
        %v908 = vmul.f32 %v847, %v492
        %v909 = vmul.f32 %v852, %v493
        %v910 = vmul.f32 %v857, %v494
        %v911 = vmul.f32 %v862, %v495
        %v912 = vmul.f32 %v867, %v496
        %v913 = vmul.f32 %v872, %v497
        %v914 = vmul.f32 %v877, %v498
        %v915 = vmul.f32 %v882, %v499
        %v916 = vmul.f32 %v887, %v500
        %v917 = vmul.f32 %v892, %v501
        %v918 = vmul.f32 %v897, %v502
        %v919 = vmul.f32 %v902, %v503
        %v920 = vld [vmem:[#allocation2] sm:$0xff]
        %v921 = vld [vmem:[%s313] sm:$0xff]
        %922 = vmatpush.msra.mxu0 %v919
        %923 = vmatpush.msra.mxu0 %v918
        %924 = vmatpush.msra.mxu0 %v917
        %925 = vmatpush.msra.mxu0 %v916
        %926 = vmatpush.msra.mxu0 %v915
        %927 = vmatpush.msra.mxu0 %v914
        %928 = vmatpush.msra.mxu0 %v913
        %929 = vmatpush.msra.mxu0 %v912
        %930 = vmatpush.msra.mxu0 %v911
        %931 = vmatpush.msra.mxu0 %v910
        %932 = vmatpush.msra.mxu0 %v909
        %933 = vmatpush.msra.mxu0 %v908
        %934 = vmatpush.msra.mxu0 %v907
        %935 = vmatpush.msra.mxu0 %v906
        %936 = vmatpush.msra.mxu0 %v905
        %937 = vmatpush.msra.mxu0 %v904
        %938 = vmatmul.f32.gmra.mxu0 %v921
        %v939 = vpop.f32.mrf.mxu0
        %v940 = vadd.f32 0.0, %v939
        %941 = vdwg.mxu0
        %v942 = vadd.f32 %v920, %v940
        %943 = vst [vmem:[#allocation2] sm:$0xff] %v942
        %p944 = scmp.eq.s32.totalorder %s23, 3
        // Predicated region
        $region49: #{tpu_custom_call.1} parent=43 // pred_check
          %p945 = pneg %p944
        $region50: #{tpu_custom_call.1} parent=43 // pred_check_branch
          %947 = sbr.rel (%p945) target = $region52
        $region51: #{tpu_custom_call.1} parent=43 // pred_region
          %v948 = vld [vmem:[#allocation2] sm:$0xff]
          %v949 = vld [vmem:[%s5] sm:$0x1]
          %v951 = vperm.slane %v949, 0
          %v953 = vadd.f32 %v948, %v951
          %954 = vst [vmem:[#allocation3] sm:$0xff] %v953
        $region52: #{tpu_custom_call.1} parent=43 // pred_fallthru
          _
        // Predicated region
        $region53: #{tpu_custom_call.1} parent=43 // pred_check
          %p955 = pneg %p196
        $region54: #{tpu_custom_call.1} parent=43 // pred_check_branch
          %957 = sbr.rel (%p955) target = $region56
        $region55: #{tpu_custom_call.1} parent=43 // pred_region
          %959 = vsyncadd [#allocation4], 0
          %s960 = smul.addr %s22, 8
          %s961 = scalar_lea.hbm %s6, %s960
          %s963 = sshll.u32 [#allocation3], 4
          %s964 = int_to_ptr.vmem [resolvable:$true] %s963
          %s965 = sshll.u32 %s961, 4
          %s966 = int_to_ptr.hbm [resolvable:$true] %s965
          %968 = dma.vmem_to_hbm [thread:$0]  %s964, 128, %s966, [#allocation4]
        $region56: #{tpu_custom_call.1} parent=43 // pred_fallthru
          _
        // Predicated region
        $region57: #{tpu_custom_call.1} parent=43 // pred_check
          %p969 = pneg %p196
        $region58: #{tpu_custom_call.1} parent=43 // pred_check_branch
          %971 = sbr.rel (%p969) target = $region60
        $region59: #{tpu_custom_call.1} parent=43 // pred_region
          %973 = dma.done [#allocation4], 128
        $region60: #{tpu_custom_call.1} parent=43 // pred_fallthru
          _
      $region44: #{tpu_custom_call.1} parent=5 // pred_fallthru
        _
      %p974 = scmp.le.s32.totalorder 2, %s13
      // Predicated region
      $region61: #{tpu_custom_call.1} parent=5 // pred_check
        %p975 = pneg %p974
      $region62: #{tpu_custom_call.1} parent=5 // pred_check_branch
        %977 = sbr.rel (%p975) target = $region64
      $region63: #{tpu_custom_call.1} parent=5 // pred_region
        %s978 = ssub.s32 %s13, 2
      $region64: #{tpu_custom_call.1} parent=5 // pred_fallthru
        _
    $region6: #{tpu_custom_call.1} parent=1 // loop_footer
      %s17 = sadd.s32 1, %s13
    $region7: #{tpu_custom_call.1} parent=1 // loop_footer_branch
      %12 = sbr.rel target = $region3
    $region8: #{tpu_custom_call.1} parent=1 // loop_exit
      _
    %979 = vsyncpa [#allocation4], 1
    %s980 = scalar_lea.sflag [#allocation4], 1
    %981 = vsyncpa %s980, 1

</llo_original>
